<compile_context>
chip_gen: v7x
topology: tpu7x:2x2x1
jax: 0.10.0
libtpu: 0.0.40
codegen_flags: <defaults>
</compile_context>

<pallas_src>
import jax
import jax.numpy as jnp
from jax.experimental import pallas as pl
from jax.experimental.pallas import tpu as pltpu

d = 10   # input features  (matches module-level `d` in 2layer.py)
m = 10   # hidden width    (matches module-level `m` in 2layer.py)
OUT = 2  # output features of the second Linear

_SUB = 8                  # sublane granularity for the batch (second-to-last) dim
_MIN_SPLIT_ROWS = 4096    # only split a single big tile in two above this batch size


def _round_up(x, n):
    return ((x + n - 1) // n) * n


def mlp_kernel(x_ref, w1_ref, w2_ref, o_ref):
    # Fused hot path: matmul -> ReLU -> matmul, f32 accumulation on the MXU.
    # All operands are unpadded; narrow K/N dims are handled by the MXU and are
    # nowhere near the bottleneck (the kernel is HBM-bound).
    h = jnp.dot(x_ref[...], w1_ref[...], preferred_element_type=jnp.float32)
    h = jnp.maximum(h, 0.0)  # ReLU (torch's inplace=True is irrelevant here)
    y = jnp.dot(h, w2_ref[...], preferred_element_type=jnp.float32)
    o_ref[...] = y.astype(o_ref.dtype)


def two_layer_net(x, w1, w2, *, tile_b=8192, min_pallas_batch=4096,
                  force_pallas=False):
    """x: (B, d) f32; w1: (d, m) f32; w2: (m, OUT) f32  ->  (B, OUT) f32."""
    B, d_in = x.shape
    m_hid = w1.shape[1]
    out_dim = w2.shape[1]

    # Small-batch bypass: at toy sizes the custom-call launch + one grid step cost
    # far more than XLA's fused matmul-ReLU-matmul.
    if not force_pallas and B < min_pallas_batch:
        return jnp.maximum(x @ w1, 0.0) @ w2

    # Clamp the batch tile for small batches (keep it a sublane multiple).
    tile_b = max(_SUB, min(_round_up(tile_b, _SUB), _round_up(B, _SUB)))
    # v7x has 2 TensorCores: for large batches make sure there are >= 2 grid steps
    # so both cores get work (no-op on single-TC v5e/v6e).
    if B >= 2 * _MIN_SPLIT_ROWS:
        tile_b = min(tile_b, _round_up(pl.cdiv(B, 2), _SUB))

    # Pad the batch only when needed; in the aligned case x streams straight from HBM
    # with no extra copy pass.
    b_p = _round_up(B, tile_b)
    if b_p == B:
        x_p = x
    else:
        x_p = jnp.zeros((b_p, d_in), x.dtype).at[:B, :].set(x)

    grid = (b_p // tile_b,)

    y_p = pl.pallas_call(
        mlp_kernel,
        out_shape=jax.ShapeDtypeStruct((b_p, out_dim), x.dtype),
        grid=grid,
        in_specs=[
            # x streams along the batch axis; last dim = full array dim (no 128 rule).
            pl.BlockSpec((tile_b, d_in), lambda i: (i, 0)),
            # Weights: same (full) block every step -> fetched once, VMEM-resident.
            pl.BlockSpec((d_in, m_hid), lambda i: (0, 0)),
            pl.BlockSpec((m_hid, out_dim), lambda i: (0, 0)),
        ],
        # Output stays at its real width (2); masked vst cost is negligible vs the
        # 64x HBM write inflation that lane-padding it would cause.
        out_specs=pl.BlockSpec((tile_b, out_dim), lambda i: (i, 0)),
        compiler_params=pltpu.CompilerParams(
            # Batch axis is embarrassingly parallel -> shards across v7x's 2 TCs.
            dimension_semantics=("parallel",),
            # Narrow blocks lane-pad to 512 B/row inside VMEM; ~20 MiB peak at
            # tile_b=8192, so raise v5e's 16 MiB scoped default (32 MiB is already
            # the default on v6e/v7x and is well under every physical capacity).
            vmem_limit_bytes=32 * 1024 * 1024,
        ),
    )(x_p, w1, w2)

    # Strip batch padding only if any was added (padded rows are exactly zero).
    return y_p if b_p == B else y_p[:B, :]


def reference(x, w1, w2):
    return jnp.maximum(x @ w1, 0.0) @ w2


if __name__ == "__main__":
    key = jax.random.PRNGKey(0)
    kx, k1, k2, kx2, kx3 = jax.random.split(key, 5)

    # Deterministic parameter init, mimicking nn.Linear's uniform(-1/sqrt(fan_in), ...).
    bound1 = 1.0 / (d ** 0.5)
    bound2 = 1.0 / (m ** 0.5)
    # PyTorch stores weight as (out, in); we store the transpose (in, out).
    w1 = jax.random.uniform(k1, (d, m), minval=-bound1, maxval=bound1, dtype=jnp.float32)
    w2 = jax.random.uniform(k2, (m, OUT), minval=-bound2, maxval=bound2, dtype=jnp.float32)

    # 1) Toy batch matching the module's usage, forced through the Pallas path.
    B = 8
    x = jax.random.normal(kx, (B, d), dtype=jnp.float32)
    y = jax.block_until_ready(two_layer_net(x, w1, w2, force_pallas=True))
    y_ref = reference(x, w1, w2)
    assert y.shape == (B, OUT), y.shape
    assert jnp.allclose(y, y_ref, atol=1e-5, rtol=1e-5), "mismatch vs reference (B=8, pallas)"

    # 2) Ragged batch: exercises multi-step batch tiling + the padded-last-tile path.
    B2 = 300
    x2 = jax.random.normal(kx2, (B2, d), dtype=jnp.float32)
    y2 = jax.block_until_ready(two_layer_net(x2, w1, w2, tile_b=128, force_pallas=True))
    y2_ref = reference(x2, w1, w2)
    assert y2.shape == (B2, OUT), y2.shape
    assert jnp.allclose(y2, y2_ref, atol=1e-5, rtol=1e-5), "mismatch vs reference (B=300)"

    # 3) Aligned batch: exercises the no-padding-copy fast path with multiple grid steps.
    B3 = 256
    x3 = jax.random.normal(kx3, (B3, d), dtype=jnp.float32)
    y3 = jax.block_until_ready(two_layer_net(x3, w1, w2, tile_b=128, force_pallas=True))
    y3_ref = reference(x3, w1, w2)
    assert y3.shape == (B3, OUT), y3.shape
    assert jnp.allclose(y3, y3_ref, atol=1e-5, rtol=1e-5), "mismatch vs reference (B=256)"

    # 4) Default dispatch at toy size takes the small-batch bypass (plain jnp).
    y4 = jax.block_until_ready(two_layer_net(x, w1, w2))
    assert jnp.allclose(y4, y_ref, atol=1e-5, rtol=1e-5), "mismatch vs reference (bypass)"

    print("KERNEL_OK")
</pallas_src>

<mosaic_0001>
module attributes {stable_mosaic.version = 11 : i64} {
  func.func @mlp_kernel(%arg0: i32, %arg1: memref<8x10xf32, #tpu.memory_space<vmem>>, %arg2: memref<10x10xf32, #tpu.memory_space<vmem>>, %arg3: memref<10x2xf32, #tpu.memory_space<vmem>>, %arg4: memref<8x2xf32, #tpu.memory_space<vmem>>) attributes {dimension_semantics = [#tpu.dimension_semantics<parallel>], iteration_bounds = array<i64: 1>, scalar_prefetch = 0 : i64, scratch_operands = 0 : i64, tpu.core_type = #tpu.core_type<tc>, window_params = [{transform_indices = @transform_0, window_bounds = array<i64: 8, 10>}, {pipeline_mode = #tpu.pipeline_mode<synchronous>, transform_indices = @transform_1, window_bounds = array<i64: 10, 10>}, {pipeline_mode = #tpu.pipeline_mode<synchronous>, transform_indices = @transform_2, window_bounds = array<i64: 10, 2>}, {transform_indices = @transform_3, window_bounds = array<i64: 8, 2>}]} {
    %c0 = arith.constant 0 : index
    %c0_0 = arith.constant 0 : index
    %0 = vector.load %arg1[%c0, %c0_0] : memref<8x10xf32, #tpu.memory_space<vmem>>, vector<8x10xf32>
    %c0_1 = arith.constant 0 : index
    %c0_2 = arith.constant 0 : index
    %1 = vector.load %arg2[%c0_1, %c0_2] : memref<10x10xf32, #tpu.memory_space<vmem>>, vector<10x10xf32>
    %cst = arith.constant dense<0.000000e+00> : vector<8x10xf32>
    %2 = tpu.matmul %0, %1, %cst {dimension_numbers = #tpu.dot_dimension_numbers<[1], [0], [0], [1], [0, 0, 1, 1], [], []>} : vector<8x10xf32>, vector<10x10xf32>, vector<8x10xf32> -> vector<8x10xf32>
    %cst_3 = arith.constant 0.000000e+00 : f32
    %3 = vector.broadcast %cst_3 : f32 to vector<8x10xf32>
    %4 = arith.maximumf %2, %3 : vector<8x10xf32>
    %c0_4 = arith.constant 0 : index
    %c0_5 = arith.constant 0 : index
    %5 = vector.load %arg3[%c0_4, %c0_5] : memref<10x2xf32, #tpu.memory_space<vmem>>, vector<10x2xf32>
    %cst_6 = arith.constant dense<0.000000e+00> : vector<8x2xf32>
    %6 = tpu.matmul %4, %5, %cst_6 {dimension_numbers = #tpu.dot_dimension_numbers<[1], [0], [0], [1], [0, 0, 1, 1], [], []>} : vector<8x10xf32>, vector<10x2xf32>, vector<8x2xf32> -> vector<8x2xf32>
    %c0_7 = arith.constant 0 : index
    %c0_8 = arith.constant 0 : index
    %7 = vector.load %arg4[%c0_7, %c0_8] : memref<8x2xf32, #tpu.memory_space<vmem>>, vector<8x2xf32>
    tpu.vector_store %arg4[%c0_7, %c0_8], %6 {strides = array<i32>} : memref<8x2xf32, #tpu.memory_space<vmem>>, vector<8x2xf32>,
    return
  }
  func.func @transform_0(%arg0: i32) -> (i32, i32) {
    %c0_i32 = arith.constant 0 : i32
    %c0_i32_0 = arith.constant 0 : i32
    return %arg0, %c0_i32 : i32, i32
  }
  func.func @transform_1(%arg0: i32) -> (i32, i32) {
    %c0_i32 = arith.constant 0 : i32
    %c0_i32_0 = arith.constant 0 : i32
    %c0_i32_1 = arith.constant 0 : i32
    return %c0_i32, %c0_i32_0 : i32, i32
  }
  func.func @transform_2(%arg0: i32) -> (i32, i32) {
    %c0_i32 = arith.constant 0 : i32
    %c0_i32_0 = arith.constant 0 : i32
    %c0_i32_1 = arith.constant 0 : i32
    return %c0_i32, %c0_i32_0 : i32, i32
  }
  func.func @transform_3(%arg0: i32) -> (i32, i32) {
    %c0_i32 = arith.constant 0 : i32
    %c0_i32_0 = arith.constant 0 : i32
    return %arg0, %c0_i32 : i32, i32
  }
}

</mosaic_0001>

<llo_original>
// kernel: tpu_custom_call.1
$region0: #{tpu_custom_call.1}
  #allocation0 [shape = 'u32[]', space=smem, size = 0x4, offset = 0x4, fixed_abs, tag = 'smem constant byte address 0x4 - core index']
  #allocation1 [shape = 'u32[144,128]{1,0:T(1,128)}', space=vmem, size = 0x12000, scoped, tag = 'internal scratch']
  %s0 = inlined_call_operand.hbm [shape: f32[8,10], index: 0, kind: input, shape index: {}]
  %s1 = inlined_call_operand.vmem [shape: f32[10,10], index: 1, kind: input, shape index: {}]
  %s2 = inlined_call_operand.vmem [shape: f32[10,2], index: 2, kind: input, shape index: {}]
  %s3 = inlined_call_operand.vmem [shape: f32[8,2], index: 3, kind: output, shape index: {}]
  %s4 = sld [smem:[#allocation0]]
  $region26: #{tpu_custom_call.1} parent=0
    _
  %s6 = ssub.s32 1, %s4
  %s7 = scalar_select 0, %s6, %s4
  $region1: #{tpu_custom_call.1} parent=0
    #allocation2 [shape = 'u8[4096]{0}', space=vmem, size = 0x1000, scoped, tag = 'input window, operand 0, single buffered']
    #allocation3 [shape = 's32[1]{0}', space=sflag, size = 0x4, scoped, tag = 'scoped memory for tpu_custom_call.1']
    %8 = vsyncpa [#allocation3], 0
    // Predicated region
    $region2: #{tpu_custom_call.1} parent=1 // pred_check
      _
    $region3: #{tpu_custom_call.1} parent=1 // pred_check_branch
      %10 = sbr.rel (0) target = $region5
    $region4: #{tpu_custom_call.1} parent=1 // pred_region
      %s12 = ssub.s32 128, 128
      %13 = vsyncadd [#allocation3], %s12
      %s15 = sshll.u32 [#allocation2], 4
      %s16 = int_to_ptr.vmem [resolvable:$true] %s15
      %18 = dma.hbm_to_vmem [thread:$0]  %s0, 128, %s16, [#allocation3]
    $region5: #{tpu_custom_call.1} parent=1 // pred_fallthru
      _
    // Predicated region
    $region6: #{tpu_custom_call.1} parent=1 // pred_check
      _
    $region7: #{tpu_custom_call.1} parent=1 // pred_check_branch
      %20 = sbr.rel (0) target = $region9
    $region8: #{tpu_custom_call.1} parent=1 // pred_region
      _
    $region9: #{tpu_custom_call.1} parent=1 // pred_fallthru
      _
    // Predicated region
    $region10: #{tpu_custom_call.1} parent=1 // pred_check
      _
    $region11: #{tpu_custom_call.1} parent=1 // pred_check_branch
      %22 = sbr.rel (0) target = $region13
    $region12: #{tpu_custom_call.1} parent=1 // pred_region
      _
    $region13: #{tpu_custom_call.1} parent=1 // pred_fallthru
      _
    // Predicated region
    $region14: #{tpu_custom_call.1} parent=1 // pred_check
      _
    $region15: #{tpu_custom_call.1} parent=1 // pred_check_branch
      %24 = sbr.rel (0) target = $region17
    $region16: #{tpu_custom_call.1} parent=1 // pred_region
      %25 = dma.done [#allocation3], 128
    $region17: #{tpu_custom_call.1} parent=1 // pred_fallthru
      _
    %v26 = vld [vmem:[#allocation2] sm:$0xff]
    %v27 = vld [vmem:[%s1] sm:$0xff]
    %v28 = vld [vmem:[%s1 + $0x8] sm:$0x3]
    %vm29 = vcmask 80896
    %v31 = vsel %vm29, %v26, 0
    %vm33 = vcmask 1041408
    %v35 = vsel %vm33, %v28, 0
    %37 = vmatprep.subr.mxu0 0.0
    %38 = vmatpush1.msra.mxu0 %v27
    %39 = vmatprep.subr.mxu0 0.0
    %40 = vmatpush1.msra.mxu0 %v35
    %41 = vmatprep.subr.mxu0 0.0
    %42 = vmatpush1.msra.mxu0 0.0
    %43 = vmatprep.subr.mxu0 0.0
    %44 = vmatpush1.msra.mxu0 0.0
    %45 = vmatprep.subr.mxu0 0.0
    %46 = vmatpush1.msra.mxu0 0.0
    %47 = vmatprep.subr.mxu0 0.0
    %48 = vmatpush1.msra.mxu0 0.0
    %49 = vmatprep.subr.mxu0 0.0
    %50 = vmatpush1.msra.mxu0 0.0
    %51 = vmatprep.subr.mxu0 0.0
    %52 = vmatpush1.msra.mxu0 0.0
    %53 = vmatprep.subr.mxu0 0.0
    %54 = vmatpush1.msra.mxu0 0.0
    %55 = vmatprep.subr.mxu0 0.0
    %56 = vmatpush1.msra.mxu0 0.0
    %57 = vmatprep.subr.mxu0 0.0
    %58 = vmatpush1.msra.mxu0 0.0
    %59 = vmatprep.subr.mxu0 0.0
    %60 = vmatpush1.msra.mxu0 0.0
    %61 = vmatprep.subr.mxu0 0.0
    %62 = vmatpush1.msra.mxu0 0.0
    %63 = vmatprep.subr.mxu0 0.0
    %64 = vmatpush1.msra.mxu0 0.0
    %65 = vmatprep.subr.mxu0 0.0
    %66 = vmatpush1.msra.mxu0 0.0
    %67 = vmatprep.subr.mxu0 0.0
    %68 = vmatpush1.msra.mxu0 0.0
    %69 = vmatprep.subr.mxu0 0.0
    %70 = vmatpush1.msra.mxu0 0.0
    %71 = vmatprep.subr.mxu0 0.0
    %72 = vmatpush1.msra.mxu0 0.0
    %73 = vmatprep.subr.mxu0 0.0
    %74 = vmatpush1.msra.mxu0 0.0
    %75 = vmatprep.subr.mxu0 0.0
    %76 = vmatpush1.msra.mxu0 0.0
    %77 = vmatprep.subr.mxu0 0.0
    %78 = vmatpush1.msra.mxu0 0.0
    %79 = vmatprep.subr.mxu0 0.0
    %80 = vmatpush1.msra.mxu0 0.0
    %81 = vmatprep.subr.mxu0 0.0
    %82 = vmatpush1.msra.mxu0 0.0
    %83 = vmatprep.subr.mxu0 0.0
    %84 = vmatpush1.msra.mxu0 0.0
    %85 = vmatprep.subr.mxu0 0.0
    %86 = vmatpush1.msra.mxu0 0.0
    %87 = vmatprep.subr.mxu0 0.0
    %88 = vmatpush1.msra.mxu0 0.0
    %89 = vmatprep.subr.mxu0 0.0
    %90 = vmatpush1.msra.mxu0 0.0
    %91 = vmatprep.subr.mxu0 0.0
    %92 = vmatpush1.msra.mxu0 0.0
    %93 = vmatprep.subr.mxu0 0.0
    %94 = vmatpush1.msra.mxu0 0.0
    %95 = vmatprep.subr.mxu0 0.0
    %96 = vmatpush1.msra.mxu0 0.0
    %97 = vmatprep.subr.mxu0 0.0
    %98 = vmatpush1.msra.mxu0 0.0
    %99 = vmatprep.subr.mxu0 0.0
    %100 = vmatpush1.msra.mxu0 0.0
    %101 = vmatprep.mubr.f32.mxu0 0.0
    %102 = vmatmul.mubr.f32.gmra.mrb[0].mxu0 %v31
    %v103 = vpop.f32.mrb[0].mxu0
    %v104 = vadd.f32 0.0, %v103
    %v105 = vpop.f32.mrb[0].mxu0
    %106 = vdwg.mxu0
    %v107 = vmax.f32 %v104, 0.0
    %v108 = vld [vmem:[%s2] sm:$0xff]
    %v109 = vld [vmem:[%s2 + $0x8] sm:$0x3]
    %v111 = vsel %vm29, %v107, 0
    %v114 = vsel %vm33, %v109, 0
    %116 = vmatprep.subr.mxu0 0.0
    %117 = vmatpush1.msra.mxu0 %v108
    %118 = vmatprep.subr.mxu0 0.0
    %119 = vmatpush1.msra.mxu0 %v114
    %120 = vmatprep.subr.mxu0 0.0
    %121 = vmatpush1.msra.mxu0 0.0
    %122 = vmatprep.subr.mxu0 0.0
    %123 = vmatpush1.msra.mxu0 0.0
    %124 = vmatprep.subr.mxu0 0.0
    %125 = vmatpush1.msra.mxu0 0.0
    %126 = vmatprep.subr.mxu0 0.0
    %127 = vmatpush1.msra.mxu0 0.0
    %128 = vmatprep.subr.mxu0 0.0
    %129 = vmatpush1.msra.mxu0 0.0
    %130 = vmatprep.subr.mxu0 0.0
    %131 = vmatpush1.msra.mxu0 0.0
    %132 = vmatprep.subr.mxu0 0.0
    %133 = vmatpush1.msra.mxu0 0.0
    %134 = vmatprep.subr.mxu0 0.0
    %135 = vmatpush1.msra.mxu0 0.0
    %136 = vmatprep.subr.mxu0 0.0
    %137 = vmatpush1.msra.mxu0 0.0
    %138 = vmatprep.subr.mxu0 0.0
    %139 = vmatpush1.msra.mxu0 0.0
    %140 = vmatprep.subr.mxu0 0.0
    %141 = vmatpush1.msra.mxu0 0.0
    %142 = vmatprep.subr.mxu0 0.0
    %143 = vmatpush1.msra.mxu0 0.0
    %144 = vmatprep.subr.mxu0 0.0
    %145 = vmatpush1.msra.mxu0 0.0
    %146 = vmatprep.subr.mxu0 0.0
    %147 = vmatpush1.msra.mxu0 0.0
    %148 = vmatprep.subr.mxu0 0.0
    %149 = vmatpush1.msra.mxu0 0.0
    %150 = vmatprep.subr.mxu0 0.0
    %151 = vmatpush1.msra.mxu0 0.0
    %152 = vmatprep.subr.mxu0 0.0
    %153 = vmatpush1.msra.mxu0 0.0
    %154 = vmatprep.subr.mxu0 0.0
    %155 = vmatpush1.msra.mxu0 0.0
    %156 = vmatprep.subr.mxu0 0.0
    %157 = vmatpush1.msra.mxu0 0.0
    %158 = vmatprep.subr.mxu0 0.0
    %159 = vmatpush1.msra.mxu0 0.0
    %160 = vmatprep.subr.mxu0 0.0
    %161 = vmatpush1.msra.mxu0 0.0
    %162 = vmatprep.subr.mxu0 0.0
    %163 = vmatpush1.msra.mxu0 0.0
    %164 = vmatprep.subr.mxu0 0.0
    %165 = vmatpush1.msra.mxu0 0.0
    %166 = vmatprep.subr.mxu0 0.0
    %167 = vmatpush1.msra.mxu0 0.0
    %168 = vmatprep.subr.mxu0 0.0
    %169 = vmatpush1.msra.mxu0 0.0
    %170 = vmatprep.subr.mxu0 0.0
    %171 = vmatpush1.msra.mxu0 0.0
    %172 = vmatprep.subr.mxu0 0.0
    %173 = vmatpush1.msra.mxu0 0.0
    %174 = vmatprep.subr.mxu0 0.0
    %175 = vmatpush1.msra.mxu0 0.0
    %176 = vmatprep.subr.mxu0 0.0
    %177 = vmatpush1.msra.mxu0 0.0
    %178 = vmatprep.subr.mxu0 0.0
    %179 = vmatpush1.msra.mxu0 0.0
    %180 = vmatprep.mubr.f32.mxu0 0.0
    %181 = vmatmul.mubr.f32.gmra.mrb[0].mxu0 %v111
    %v182 = vpop.f32.mrb[0].mxu0
    %v183 = vadd.f32 0.0, %v182
    %v184 = vpop.f32.mrb[0].mxu0
    %185 = vdwg.mxu0
    %vm186 = vcmask 15360
    %187 = vst.msk [vmem:[%s3] sm:$0xff] %vm186, %v183
    // Predicated region
    $region18: #{tpu_custom_call.1} parent=1 // pred_check
      _
    $region19: #{tpu_custom_call.1} parent=1 // pred_check_branch
      %189 = sbr.rel (0) target = $region21
    $region20: #{tpu_custom_call.1} parent=1 // pred_region
      _
    $region21: #{tpu_custom_call.1} parent=1 // pred_fallthru
      _
    // Predicated region
    $region22: #{tpu_custom_call.1} parent=1 // pred_check
      _
    $region23: #{tpu_custom_call.1} parent=1 // pred_check_branch
      %191 = sbr.rel (0) target = $region25
    $region24: #{tpu_custom_call.1} parent=1 // pred_region
      _
    $region25: #{tpu_custom_call.1} parent=1 // pred_fallthru
      _
    %192 = vsyncpa [#allocation3], 1

</llo_original>
